<compile_context>
chip_gen: v7x
topology: tpu7x:2x2x1
jax: 0.10.0
libtpu: 0.0.40
codegen_flags: <defaults>
</compile_context>

<pallas_src>
import functools

import jax
import jax.numpy as jnp
from jax import lax
from jax.experimental import pallas as pl
from jax.experimental.pallas import tpu as pltpu

MAT_DIFF_LOSS_SCALE = 0.001


def _per_sample_terms(pred, tgt, trans):
    """Per-sample loss terms for one batch block.

    pred  : (TB, C)    float32 log-probabilities
    tgt   : (TB, 1)    int32 class ids
    trans : (TB, K, K) float32 feature transforms

    Returns (nll_i, fro_i), both (TB, 1) float32:
      nll_i[i] = -pred[i, tgt[i]]
      fro_i[i] = || trans[i] @ trans[i]^T - I ||_F
    """
    tb, c = pred.shape
    onehot = (lax.broadcasted_iota(jnp.int32, (tb, c), 1) == tgt).astype(jnp.float32)
    nll_i = -jnp.sum(pred * onehot, axis=1, keepdims=True)                 # (TB, 1)

    k = trans.shape[-1]
    # Batched gram: contract the last dims directly (no XLU transpose of trans).
    gram = jnp.einsum("bij,bkj->bik", trans, trans,
                      preferred_element_type=jnp.float32)                  # (TB, K, K)
    eye = (lax.broadcasted_iota(jnp.int32, (k, k), 0)
           == lax.broadcasted_iota(jnp.int32, (k, k), 1)).astype(jnp.float32)
    diff = gram - eye[None]                                                # eye built once per body
    sq = jnp.sum(diff * diff, axis=2)                                      # (TB, K)
    fro_i = jnp.sqrt(jnp.sum(sq, axis=1, keepdims=True))                   # (TB, 1)
    return nll_i, fro_i


def _get_loss_single_kernel(pred_ref, target_ref, trans_ref, out_ref, *, scale):
    """grid=() path: whole problem in one body; scalar total loss to SMEM."""
    nll_i, fro_i = _per_sample_terms(pred_ref[...].astype(jnp.float32),
                                     target_ref[...],
                                     trans_ref[...].astype(jnp.float32))
    b = jnp.float32(pred_ref.shape[0])
    out_ref[0, 0] = (jnp.sum(nll_i) + jnp.sum(fro_i) * jnp.float32(scale)) / b


def _get_loss_block_kernel(pred_ref, target_ref, trans_ref, nll_ref, fro_ref):
    """Batch-tiled path: emit per-sample terms for this block (fully parallel)."""
    nll_i, fro_i = _per_sample_terms(pred_ref[...].astype(jnp.float32),
                                     target_ref[...],
                                     trans_ref[...].astype(jnp.float32))
    nll_ref[...] = nll_i
    fro_ref[...] = fro_i


def _pick_block_b(B, K, C):
    """Largest batch block whose double-buffered footprint fits comfortably in
    VMEM on the smallest generation (v7x: 64 MiB physical, 32 MiB scoped)."""
    budget_bytes = 8 * 1024 * 1024                 # per pipeline buffer
    per_sample_bytes = 4 * (K * K + C + 1)
    max_tb = max(8, budget_bytes // per_sample_bytes)
    if B <= max_tb:
        return B                                   # single-shot kernel
    tb = (max_tb // 8) * 8                         # (TB, C) pred block needs TB % 8 == 0
    while tb >= 8 and B % tb != 0:
        tb -= 8
    # Fallback: no suitable divisor -> single shot (may need vmem_limit_bytes bump).
    return tb if tb >= 8 else B


def get_loss_pallas(pred, target, trans_feat, mat_diff_loss_scale=MAT_DIFF_LOSS_SCALE):
    """pred: (B, C) f32 log-probs; target: (B,) int; trans_feat: (B, K, K) f32."""
    B, C = pred.shape
    Bt, K, K2 = trans_feat.shape
    assert Bt == B and K == K2
    target2d = target.astype(jnp.int32).reshape(B, 1)

    tb = _pick_block_b(B, K, C)

    if tb == B:
        # Single-shot: one body, one contiguous DMA, no per-step overhead.
        out = pl.pallas_call(
            functools.partial(_get_loss_single_kernel,
                              scale=float(mat_diff_loss_scale)),
            out_shape=jax.ShapeDtypeStruct((1, 1), jnp.float32),
            in_specs=[
                pl.BlockSpec(memory_space=pltpu.MemorySpace.VMEM),   # pred
                pl.BlockSpec(memory_space=pltpu.MemorySpace.VMEM),   # target
                pl.BlockSpec(memory_space=pltpu.MemorySpace.VMEM),   # trans_feat
            ],
            out_specs=pl.BlockSpec(memory_space=pltpu.MemorySpace.SMEM),
        )(pred, target2d, trans_feat)
        return out[0, 0]

    # Large-batch path: tile the batch, keep the axis "parallel" (v7x dual TC),
    # write per-sample terms and do the tiny final reduction in plain JAX.
    nb = B // tb
    nll_i, fro_i = pl.pallas_call(
        _get_loss_block_kernel,
        out_shape=(jax.ShapeDtypeStruct((B, 1), jnp.float32),
                   jax.ShapeDtypeStruct((B, 1), jnp.float32)),
        grid_spec=pltpu.PrefetchScalarGridSpec(
            num_scalar_prefetch=0,
            grid=(nb,),
            in_specs=[
                pl.BlockSpec((tb, C), lambda i: (i, 0)),
                pl.BlockSpec((tb, 1), lambda i: (i, 0)),
                pl.BlockSpec((tb, K, K), lambda i: (i, 0, 0)),
            ],
            out_specs=[
                pl.BlockSpec((tb, 1), lambda i: (i, 0)),
                pl.BlockSpec((tb, 1), lambda i: (i, 0)),
            ],
        ),
        compiler_params=pltpu.CompilerParams(
            dimension_semantics=("parallel",),
        ),
    )(pred, target2d, trans_feat)
    return jnp.mean(nll_i) + jnp.mean(fro_i) * jnp.float32(mat_diff_loss_scale)


def get_loss_ref(pred, target, trans_feat):
    """Plain-JAX reference matching the PyTorch module."""
    B = pred.shape[0]
    nll = -jnp.mean(pred[jnp.arange(B), target])
    K = trans_feat.shape[1]
    gram = jnp.einsum("bij,bkj->bik", trans_feat, trans_feat)
    diff = gram - jnp.eye(K, dtype=trans_feat.dtype)[None]
    reg = jnp.mean(jnp.sqrt(jnp.sum(diff * diff, axis=(1, 2))))
    return nll + reg * MAT_DIFF_LOSS_SCALE


if __name__ == "__main__":
    key = jax.random.PRNGKey(0)
    B, C, K = 4, 16, 64

    k1, k2, k3 = jax.random.split(key, 3)
    logits = jax.random.normal(k1, (B, C), dtype=jnp.float32)
    pred = jax.nn.log_softmax(logits, axis=-1)                  # log-probs, like PointNet
    target = jax.random.randint(k2, (B,), 0, C, dtype=jnp.int32)
    trans_feat = jax.random.normal(k3, (B, K, K), dtype=jnp.float32) * 0.1

    out = jax.block_until_ready(get_loss_pallas(pred, target, trans_feat))
    ref = jax.block_until_ready(get_loss_ref(pred, target, trans_feat))

    assert jnp.allclose(out, ref, rtol=1e-5, atol=1e-5), (out, ref)
    print("KERNEL_OK")
</pallas_src>

<mosaic_0001>
module attributes {stable_mosaic.version = 11 : i64} {
  func.func @_get_loss_single_kernel(%arg0: memref<4x16xf32, #tpu.memory_space<vmem>>, %arg1: memref<4x1xi32, #tpu.memory_space<vmem>>, %arg2: memref<4x64x64xf32, #tpu.memory_space<vmem>>, %arg3: memref<1x1xf32, #tpu.memory_space<smem>>) attributes {dimension_semantics = [], scalar_prefetch = 0 : i64, scratch_operands = 0 : i64, tpu.core_type = #tpu.core_type<tc>} {
    %c0 = arith.constant 0 : index
    %c0_0 = arith.constant 0 : index
    %0 = vector.load %arg0[%c0, %c0_0] : memref<4x16xf32, #tpu.memory_space<vmem>>, vector<4x16xf32>
    %c0_1 = arith.constant 0 : index
    %c0_2 = arith.constant 0 : index
    %1 = vector.load %arg1[%c0_1, %c0_2] : memref<4x1xi32, #tpu.memory_space<vmem>>, vector<4x1xi32>
    %c0_3 = arith.constant 0 : index
    %c0_4 = arith.constant 0 : index
    %c0_5 = arith.constant 0 : index
    %2 = vector.load %arg2[%c0_3, %c0_4, %c0_5] : memref<4x64x64xf32, #tpu.memory_space<vmem>>, vector<4x64x64xf32>
    %3 = tpu.iota {dimensions = array<i32: 1>} : vector<4x16xi32>
    %4 = vector.broadcast %1 : vector<4x1xi32> to vector<4x16xi32>
    %5 = arith.cmpi eq, %3, %4 : vector<4x16xi32>
    %6 = arith.extui %5 : vector<4x16xi1> to vector<4x16xi32>
    %7 = arith.sitofp %6 : vector<4x16xi32> to vector<4x16xf32>
    %8 = arith.mulf %0, %7 : vector<4x16xf32>
    %cst = arith.constant dense<0.000000e+00> : vector<4xf32>
    %9 = vector.multi_reduction <add>, %8, %cst [1] : vector<4x16xf32> to vector<4xf32>
    %10 = vector.shape_cast %9 : vector<4xf32> to vector<4x1xf32>
    %cst_6 = arith.constant 0.000000e+00 : f32
    %11 = vector.broadcast %cst_6 : f32 to vector<4x1xf32>
    %12 = arith.subf %11, %10 : vector<4x1xf32>
    "tpu.trace_start"() <{level = 10 : i32, message = "bij,bkj->bik"}> : () -> ()
    %cst_7 = arith.constant dense<0.000000e+00> : vector<4x64x64xf32>
    %13 = tpu.matmul %2, %2, %cst_7 {dimension_numbers = #tpu.dot_dimension_numbers<[2], [2], [1], [1], [0, 0, 0, 1, 1, 1], [0], [0]>} : vector<4x64x64xf32>, vector<4x64x64xf32>, vector<4x64x64xf32> -> vector<4x64x64xf32>
    "tpu.trace_stop"() : () -> ()
    %14 = tpu.iota {dimensions = array<i32: 0>} : vector<64x64xi32>
    %15 = tpu.iota {dimensions = array<i32: 1>} : vector<64x64xi32>
    %16 = arith.cmpi eq, %14, %15 : vector<64x64xi32>
    %17 = arith.extui %16 : vector<64x64xi1> to vector<64x64xi32>
    %18 = arith.sitofp %17 : vector<64x64xi32> to vector<64x64xf32>
    %19 = vector.shape_cast %18 : vector<64x64xf32> to vector<1x64x64xf32>
    %20 = vector.broadcast %19 : vector<1x64x64xf32> to vector<4x64x64xf32>
    %21 = arith.subf %13, %20 : vector<4x64x64xf32>
    %22 = arith.mulf %21, %21 : vector<4x64x64xf32>
    %cst_8 = arith.constant dense<0.000000e+00> : vector<4x64xf32>
    %23 = vector.multi_reduction <add>, %22, %cst_8 [2] : vector<4x64x64xf32> to vector<4x64xf32>
    %cst_9 = arith.constant dense<0.000000e+00> : vector<4xf32>
    %24 = vector.multi_reduction <add>, %23, %cst_9 [1] : vector<4x64xf32> to vector<4xf32>
    %25 = vector.shape_cast %24 : vector<4xf32> to vector<4x1xf32>
    %26 = math.sqrt %25 : vector<4x1xf32>
    %27 = vector.shape_cast %12 : vector<4x1xf32> to vector<1x4x1xf32>
    %cst_10 = arith.constant dense<0.000000e+00> : vector<1xf32>
    %28 = vector.multi_reduction <add>, %27, %cst_10 [1, 2] : vector<1x4x1xf32> to vector<1xf32>
    %29 = vector.shape_cast %28 : vector<1xf32> to vector<1x1x1xf32>
    %30 = vector.extract %29[0, 0, 0] : f32 from vector<1x1x1xf32>
    %31 = vector.shape_cast %26 : vector<4x1xf32> to vector<1x4x1xf32>
    %cst_11 = arith.constant dense<0.000000e+00> : vector<1xf32>
    %32 = vector.multi_reduction <add>, %31, %cst_11 [1, 2] : vector<1x4x1xf32> to vector<1xf32>
    %33 = vector.shape_cast %32 : vector<1xf32> to vector<1x1x1xf32>
    %34 = vector.extract %33[0, 0, 0] : f32 from vector<1x1x1xf32>
    %cst_12 = arith.constant 1.000000e-03 : f32
    %35 = arith.mulf %34, %cst_12 : f32
    %36 = arith.addf %30, %35 : f32
    %cst_13 = arith.constant 4.000000e+00 : f32
    %37 = arith.divf %36, %cst_13 : f32
    %c0_14 = arith.constant 0 : index
    %c0_15 = arith.constant 0 : index
    %38 = memref.load %arg3[%c0_14, %c0_15] : memref<1x1xf32, #tpu.memory_space<smem>>
    memref.store %37, %arg3[%c0_14, %c0_15] : memref<1x1xf32, #tpu.memory_space<smem>>
    return
  }
}

</mosaic_0001>

<llo_original>
// kernel: tpu_custom_call.1
$region0: #{tpu_custom_call.1}
  #allocation0 [shape = 'u32[]', space=smem, size = 0x4, offset = 0x4, fixed_abs, tag = 'smem constant byte address 0x4 - core index']
  #allocation1 [shape = 'u32[144,128]{1,0:T(1,128)}', space=vmem, size = 0x12000, scoped, tag = 'internal scratch']
  %s0 = inlined_call_operand.vmem [shape: f32[4,16], index: 0, kind: input, shape index: {}]
  %s1 = inlined_call_operand.vmem [shape: s32[4,1], index: 1, kind: input, shape index: {}]
  %s2 = inlined_call_operand.hbm [shape: f32[4,64,64], index: 2, kind: input, shape index: {}]
  %s3 = inlined_call_operand.hbm [shape: f32[1,1], index: 3, kind: output, shape index: {}]
  %s4 = sld [smem:[#allocation0]]
  $region26: #{tpu_custom_call.1} parent=0
    _
  %s6 = ssub.s32 1, %s4
  %s7 = scalar_select 0, %s6, %s4
  $region1: #{tpu_custom_call.1} parent=0
    #allocation2 [shape = 'u8[131072]{0}', space=vmem, size = 0x20000, scoped, tag = 'input window, operand 2, single buffered']
    #allocation3 [shape = 's32[1]{0}', space=sflag, size = 0x4, scoped, tag = 'scoped memory for tpu_custom_call.1']
    #allocation4 [shape = 's32[1]{0}', space=sflag, size = 0x4, scoped, tag = 'scoped memory for tpu_custom_call.1']
    #allocation5 [shape = 'u8[512]{0}', space=smem, size = 0x200, scoped, tag = 'output window, operand 0, single buffered']
    %8 = vsyncpa [#allocation3], 0
    %9 = vsyncpa [#allocation4], 0
    // Predicated region
    $region2: #{tpu_custom_call.1} parent=1 // pred_check
      _
    $region3: #{tpu_custom_call.1} parent=1 // pred_check_branch
      %11 = sbr.rel (0) target = $region5
    $region4: #{tpu_custom_call.1} parent=1 // pred_region
      _
    $region5: #{tpu_custom_call.1} parent=1 // pred_fallthru
      _
    // Predicated region
    $region6: #{tpu_custom_call.1} parent=1 // pred_check
      _
    $region7: #{tpu_custom_call.1} parent=1 // pred_check_branch
      %13 = sbr.rel (0) target = $region9
    $region8: #{tpu_custom_call.1} parent=1 // pred_region
      _
    $region9: #{tpu_custom_call.1} parent=1 // pred_fallthru
      _
    // Predicated region
    $region10: #{tpu_custom_call.1} parent=1 // pred_check
      _
    $region11: #{tpu_custom_call.1} parent=1 // pred_check_branch
      %15 = sbr.rel (0) target = $region13
    $region12: #{tpu_custom_call.1} parent=1 // pred_region
      %s17 = ssub.s32 4096, 4096
      %18 = vsyncadd [#allocation3], %s17
      %s19 = sshll.u32 [#allocation2], 4
      %s20 = int_to_ptr.vmem [resolvable:$true] %s19
      %25 = dma.hbm_to_vmem [thread:$0]  %s2, 4096, %s20, [#allocation3], 128, 128, 8
    $region13: #{tpu_custom_call.1} parent=1 // pred_fallthru
      _
    // Predicated region
    $region14: #{tpu_custom_call.1} parent=1 // pred_check
      _
    $region15: #{tpu_custom_call.1} parent=1 // pred_check_branch
      %27 = sbr.rel (0) target = $region17
    $region16: #{tpu_custom_call.1} parent=1 // pred_region
      %28 = dma.done [#allocation3], 4096
    $region17: #{tpu_custom_call.1} parent=1 // pred_fallthru
      _
    %v29 = vld [vmem:[%s0] sm:$0xf]
    %v30 = vld [vmem:[%s1] sm:$0xf]
    %v31 = vld [vmem:[#allocation2] sm:$0xff]
    %v32 = vld [vmem:[#allocation2 + $0x8] sm:$0xff]
    %v33 = vld [vmem:[#allocation2 + $0x10] sm:$0xff]
    %v34 = vld [vmem:[#allocation2 + $0x18] sm:$0xff]
    %v35 = vld [vmem:[#allocation2 + $0x20] sm:$0xff]
    %v36 = vld [vmem:[#allocation2 + $0x28] sm:$0xff]
    %v37 = vld [vmem:[#allocation2 + $0x30] sm:$0xff]
    %v38 = vld [vmem:[#allocation2 + $0x38] sm:$0xff]
    %v39 = vld [vmem:[#allocation2 + $0x40] sm:$0xff]
    %v40 = vld [vmem:[#allocation2 + $0x48] sm:$0xff]
    %v41 = vld [vmem:[#allocation2 + $0x50] sm:$0xff]
    %v42 = vld [vmem:[#allocation2 + $0x58] sm:$0xff]
    %v43 = vld [vmem:[#allocation2 + $0x60] sm:$0xff]
    %v44 = vld [vmem:[#allocation2 + $0x68] sm:$0xff]
    %v45 = vld [vmem:[#allocation2 + $0x70] sm:$0xff]
    %v46 = vld [vmem:[#allocation2 + $0x78] sm:$0xff]
    %v47 = vld [vmem:[#allocation2 + $0x80] sm:$0xff]
    %v48 = vld [vmem:[#allocation2 + $0x88] sm:$0xff]
    %v49 = vld [vmem:[#allocation2 + $0x90] sm:$0xff]
    %v50 = vld [vmem:[#allocation2 + $0x98] sm:$0xff]
    %v51 = vld [vmem:[#allocation2 + $0xa0] sm:$0xff]
    %v52 = vld [vmem:[#allocation2 + $0xa8] sm:$0xff]
    %v53 = vld [vmem:[#allocation2 + $0xb0] sm:$0xff]
    %v54 = vld [vmem:[#allocation2 + $0xb8] sm:$0xff]
    %v55 = vld [vmem:[#allocation2 + $0xc0] sm:$0xff]
    %v56 = vld [vmem:[#allocation2 + $0xc8] sm:$0xff]
    %v57 = vld [vmem:[#allocation2 + $0xd0] sm:$0xff]
    %v58 = vld [vmem:[#allocation2 + $0xd8] sm:$0xff]
    %v59 = vld [vmem:[#allocation2 + $0xe0] sm:$0xff]
    %v60 = vld [vmem:[#allocation2 + $0xe8] sm:$0xff]
    %v61 = vld [vmem:[#allocation2 + $0xf0] sm:$0xff]
    %v62 = vld [vmem:[#allocation2 + $0xf8] sm:$0xff]
    %v63 = vlaneseq
    %v64 = vand.u32 %v63, 127
    %65 = vset.pattern.permute.xlu0 0
    %66 = vperm.xlu0 %65, %v30
    %v67 = vpop.permute.xlu0 %66
    %vm68 = vcmp.eq.s32.totalorder %v64, %v67
    %v69 = vsel %vm68, 1, 0
    %v70 = vcvt.s32.f32 %v69
    %v71 = vmul.f32 %v29, %v70
    %vm72 = vcmask 125952
    %v73 = vsel %vm72, %v71, 0.0
    %74 = vadd.xlane.f32.xlu0 %v73
    %v75 = vpop.xlane.xlu0 %74
    %v76 = vsub.f32 0.0, %v75
    %vm77 = vcmask 523264
    %v79 = vsel %vm77, %v31, 0
    %v82 = vsel %vm77, %v32, 0
    %v85 = vsel %vm77, %v33, 0
    %v88 = vsel %vm77, %v34, 0
    %v91 = vsel %vm77, %v35, 0
    %v94 = vsel %vm77, %v36, 0
    %v97 = vsel %vm77, %v37, 0
    %v100 = vsel %vm77, %v38, 0
    %102 = vmatprep.subr.mxu0 0.0
    %103 = vmatpush1.xpose.msra.mxu0 %v79
    %104 = vmatprep.subr.mxu0 0.0
    %105 = vmatpush1.xpose.msra.mxu0 %v82
    %106 = vmatprep.subr.mxu0 0.0
    %107 = vmatpush1.xpose.msra.mxu0 %v85
    %108 = vmatprep.subr.mxu0 0.0
    %109 = vmatpush1.xpose.msra.mxu0 %v88
    %110 = vmatprep.subr.mxu0 0.0
    %111 = vmatpush1.xpose.msra.mxu0 %v91
    %112 = vmatprep.subr.mxu0 0.0
    %113 = vmatpush1.xpose.msra.mxu0 %v94
    %114 = vmatprep.subr.mxu0 0.0
    %115 = vmatpush1.xpose.msra.mxu0 %v97
    %116 = vmatprep.subr.mxu0 0.0
    %117 = vmatpush1.xpose.msra.mxu0 %v100
    %118 = vmatprep.subr.mxu0 0.0
    %119 = vmatpush1.xpose.msra.mxu0 0.0
    %120 = vmatprep.subr.mxu0 0.0
    %121 = vmatpush1.xpose.msra.mxu0 0.0
    %122 = vmatprep.subr.mxu0 0.0
    %123 = vmatpush1.xpose.msra.mxu0 0.0
    %124 = vmatprep.subr.mxu0 0.0
    %125 = vmatpush1.xpose.msra.mxu0 0.0
    %126 = vmatprep.subr.mxu0 0.0
    %127 = vmatpush1.xpose.msra.mxu0 0.0
    %128 = vmatprep.subr.mxu0 0.0
    %129 = vmatpush1.xpose.msra.mxu0 0.0
    %130 = vmatprep.subr.mxu0 0.0
    %131 = vmatpush1.xpose.msra.mxu0 0.0
    %132 = vmatprep.subr.mxu0 0.0
    %133 = vmatpush1.xpose.msra.mxu0 0.0
    %134 = vmatprep.subr.mxu0 0.0
    %135 = vmatpush1.xpose.msra.mxu0 0.0
    %136 = vmatprep.subr.mxu0 0.0
    %137 = vmatpush1.xpose.msra.mxu0 0.0
    %138 = vmatprep.subr.mxu0 0.0
    %139 = vmatpush1.xpose.msra.mxu0 0.0
    %140 = vmatprep.subr.mxu0 0.0
    %141 = vmatpush1.xpose.msra.mxu0 0.0
    %142 = vmatprep.subr.mxu0 0.0
    %143 = vmatpush1.xpose.msra.mxu0 0.0
    %144 = vmatprep.subr.mxu0 0.0
    %145 = vmatpush1.xpose.msra.mxu0 0.0
    %146 = vmatprep.subr.mxu0 0.0
    %147 = vmatpush1.xpose.msra.mxu0 0.0
    %148 = vmatprep.subr.mxu0 0.0
    %149 = vmatpush1.xpose.msra.mxu0 0.0
    %150 = vmatprep.subr.mxu0 0.0
    %151 = vmatpush1.xpose.msra.mxu0 0.0
    %152 = vmatprep.subr.mxu0 0.0
    %153 = vmatpush1.xpose.msra.mxu0 0.0
    %154 = vmatprep.subr.mxu0 0.0
    %155 = vmatpush1.xpose.msra.mxu0 0.0
    %156 = vmatprep.subr.mxu0 0.0
    %157 = vmatpush1.xpose.msra.mxu0 0.0
    %158 = vmatprep.subr.mxu0 0.0
    %159 = vmatpush1.xpose.msra.mxu0 0.0
    %160 = vmatprep.subr.mxu0 0.0
    %161 = vmatpush1.xpose.msra.mxu0 0.0
    %162 = vmatprep.subr.mxu0 0.0
    %163 = vmatpush1.xpose.msra.mxu0 0.0
    %164 = vmatprep.subr.mxu0 0.0
    %165 = vmatpush1.xpose.msra.mxu0 0.0
    %166 = vmatprep.mubr.f32.mxu0 0.0
    %167 = vmatmul.mubr.f32.gmra.mrb[0].mxu0 %v79
    %v168 = vpop.f32.mrb[0].mxu0
    %v169 = vadd.f32 0.0, %v168
    %v170 = vpop.f32.mrb[0].mxu0
    %171 = vmatprep.mubr.f32.mxu0 0.0
    %172 = vmatmul.mubr.f32.gmra.mrb[0].mxu0 %v82
    %v173 = vpop.f32.mrb[0].mxu0
    %v174 = vadd.f32 0.0, %v173
    %v175 = vpop.f32.mrb[0].mxu0
    %176 = vmatprep.mubr.f32.mxu0 0.0
    %177 = vmatmul.mubr.f32.gmra.mrb[0].mxu0 %v85
    %v178 = vpop.f32.mrb[0].mxu0
    %v179 = vadd.f32 0.0, %v178
    %v180 = vpop.f32.mrb[0].mxu0
    %181 = vmatprep.mubr.f32.mxu0 0.0
    %182 = vmatmul.mubr.f32.gmra.mrb[0].mxu0 %v88
    %v183 = vpop.f32.mrb[0].mxu0
    %v184 = vadd.f32 0.0, %v183
    %v185 = vpop.f32.mrb[0].mxu0
    %186 = vmatprep.mubr.f32.mxu0 0.0
    %187 = vmatmul.mubr.f32.gmra.mrb[0].mxu0 %v91
    %v188 = vpop.f32.mrb[0].mxu0
    %v189 = vadd.f32 0.0, %v188
    %v190 = vpop.f32.mrb[0].mxu0
    %191 = vmatprep.mubr.f32.mxu0 0.0
    %192 = vmatmul.mubr.f32.gmra.mrb[0].mxu0 %v94
    %v193 = vpop.f32.mrb[0].mxu0
    %v194 = vadd.f32 0.0, %v193
    %v195 = vpop.f32.mrb[0].mxu0
    %196 = vmatprep.mubr.f32.mxu0 0.0
    %197 = vmatmul.mubr.f32.gmra.mrb[0].mxu0 %v97
    %v198 = vpop.f32.mrb[0].mxu0
    %v199 = vadd.f32 0.0, %v198
    %v200 = vpop.f32.mrb[0].mxu0
    %201 = vmatprep.mubr.f32.mxu0 0.0
    %202 = vmatmul.mubr.f32.gmra.mrb[0].mxu0 %v100
    %v203 = vpop.f32.mrb[0].mxu0
    %v204 = vadd.f32 0.0, %v203
    %v205 = vpop.f32.mrb[0].mxu0
    %206 = vdwg.mxu0
    %v208 = vsel %vm77, %v39, 0
    %v211 = vsel %vm77, %v40, 0
    %v214 = vsel %vm77, %v41, 0
    %v217 = vsel %vm77, %v42, 0
    %v220 = vsel %vm77, %v43, 0
    %v223 = vsel %vm77, %v44, 0
    %v226 = vsel %vm77, %v45, 0
    %v229 = vsel %vm77, %v46, 0
    %231 = vmatprep.subr.mxu0 0.0
    %232 = vmatpush1.xpose.msra.mxu0 %v208
    %233 = vmatprep.subr.mxu0 0.0
    %234 = vmatpush1.xpose.msra.mxu0 %v211
    %235 = vmatprep.subr.mxu0 0.0
    %236 = vmatpush1.xpose.msra.mxu0 %v214
    %237 = vmatprep.subr.mxu0 0.0
    %238 = vmatpush1.xpose.msra.mxu0 %v217
    %239 = vmatprep.subr.mxu0 0.0
    %240 = vmatpush1.xpose.msra.mxu0 %v220
    %241 = vmatprep.subr.mxu0 0.0
    %242 = vmatpush1.xpose.msra.mxu0 %v223
    %243 = vmatprep.subr.mxu0 0.0
    %244 = vmatpush1.xpose.msra.mxu0 %v226
    %245 = vmatprep.subr.mxu0 0.0
    %246 = vmatpush1.xpose.msra.mxu0 %v229
    %247 = vmatprep.subr.mxu0 0.0
    %248 = vmatpush1.xpose.msra.mxu0 0.0
    %249 = vmatprep.subr.mxu0 0.0
    %250 = vmatpush1.xpose.msra.mxu0 0.0
    %251 = vmatprep.subr.mxu0 0.0
    %252 = vmatpush1.xpose.msra.mxu0 0.0
    %253 = vmatprep.subr.mxu0 0.0
    %254 = vmatpush1.xpose.msra.mxu0 0.0
    %255 = vmatprep.subr.mxu0 0.0
    %256 = vmatpush1.xpose.msra.mxu0 0.0
    %257 = vmatprep.subr.mxu0 0.0
    %258 = vmatpush1.xpose.msra.mxu0 0.0
    %259 = vmatprep.subr.mxu0 0.0
    %260 = vmatpush1.xpose.msra.mxu0 0.0
    %261 = vmatprep.subr.mxu0 0.0
    %262 = vmatpush1.xpose.msra.mxu0 0.0
    %263 = vmatprep.subr.mxu0 0.0
    %264 = vmatpush1.xpose.msra.mxu0 0.0
    %265 = vmatprep.subr.mxu0 0.0
    %266 = vmatpush1.xpose.msra.mxu0 0.0
    %267 = vmatprep.subr.mxu0 0.0
    %268 = vmatpush1.xpose.msra.mxu0 0.0
    %269 = vmatprep.subr.mxu0 0.0
    %270 = vmatpush1.xpose.msra.mxu0 0.0
    %271 = vmatprep.subr.mxu0 0.0
    %272 = vmatpush1.xpose.msra.mxu0 0.0
    %273 = vmatprep.subr.mxu0 0.0
    %274 = vmatpush1.xpose.msra.mxu0 0.0
    %275 = vmatprep.subr.mxu0 0.0
    %276 = vmatpush1.xpose.msra.mxu0 0.0
    %277 = vmatprep.subr.mxu0 0.0
    %278 = vmatpush1.xpose.msra.mxu0 0.0
    %279 = vmatprep.subr.mxu0 0.0
    %280 = vmatpush1.xpose.msra.mxu0 0.0
    %281 = vmatprep.subr.mxu0 0.0
    %282 = vmatpush1.xpose.msra.mxu0 0.0
    %283 = vmatprep.subr.mxu0 0.0
    %284 = vmatpush1.xpose.msra.mxu0 0.0
    %285 = vmatprep.subr.mxu0 0.0
    %286 = vmatpush1.xpose.msra.mxu0 0.0
    %287 = vmatprep.subr.mxu0 0.0
    %288 = vmatpush1.xpose.msra.mxu0 0.0
    %289 = vmatprep.subr.mxu0 0.0
    %290 = vmatpush1.xpose.msra.mxu0 0.0
    %291 = vmatprep.subr.mxu0 0.0
    %292 = vmatpush1.xpose.msra.mxu0 0.0
    %293 = vmatprep.subr.mxu0 0.0
    %294 = vmatpush1.xpose.msra.mxu0 0.0
    %295 = vmatprep.mubr.f32.mxu0 0.0
    %296 = vmatmul.mubr.f32.gmra.mrb[0].mxu0 %v208
    %v297 = vpop.f32.mrb[0].mxu0
    %v298 = vadd.f32 0.0, %v297
    %v299 = vpop.f32.mrb[0].mxu0
    %300 = vmatprep.mubr.f32.mxu0 0.0
    %301 = vmatmul.mubr.f32.gmra.mrb[0].mxu0 %v211
    %v302 = vpop.f32.mrb[0].mxu0
    %v303 = vadd.f32 0.0, %v302
    %v304 = vpop.f32.mrb[0].mxu0
    %305 = vmatprep.mubr.f32.mxu0 0.0
    %306 = vmatmul.mubr.f32.gmra.mrb[0].mxu0 %v214
    %v307 = vpop.f32.mrb[0].mxu0
    %v308 = vadd.f32 0.0, %v307
    %v309 = vpop.f32.mrb[0].mxu0
    %310 = vmatprep.mubr.f32.mxu0 0.0
    %311 = vmatmul.mubr.f32.gmra.mrb[0].mxu0 %v217
    %v312 = vpop.f32.mrb[0].mxu0
    %v313 = vadd.f32 0.0, %v312
    %v314 = vpop.f32.mrb[0].mxu0
    %315 = vmatprep.mubr.f32.mxu0 0.0
    %316 = vmatmul.mubr.f32.gmra.mrb[0].mxu0 %v220
    %v317 = vpop.f32.mrb[0].mxu0
    %v318 = vadd.f32 0.0, %v317
    %v319 = vpop.f32.mrb[0].mxu0
    %320 = vmatprep.mubr.f32.mxu0 0.0
    %321 = vmatmul.mubr.f32.gmra.mrb[0].mxu0 %v223
    %v322 = vpop.f32.mrb[0].mxu0
    %v323 = vadd.f32 0.0, %v322
    %v324 = vpop.f32.mrb[0].mxu0
    %325 = vmatprep.mubr.f32.mxu0 0.0
    %326 = vmatmul.mubr.f32.gmra.mrb[0].mxu0 %v226
    %v327 = vpop.f32.mrb[0].mxu0
    %v328 = vadd.f32 0.0, %v327
    %v329 = vpop.f32.mrb[0].mxu0
    %330 = vmatprep.mubr.f32.mxu0 0.0
    %331 = vmatmul.mubr.f32.gmra.mrb[0].mxu0 %v229
    %v332 = vpop.f32.mrb[0].mxu0
    %v333 = vadd.f32 0.0, %v332
    %v334 = vpop.f32.mrb[0].mxu0
    %335 = vdwg.mxu0
    %v337 = vsel %vm77, %v47, 0
    %v340 = vsel %vm77, %v48, 0
    %v343 = vsel %vm77, %v49, 0
    %v346 = vsel %vm77, %v50, 0
    %v349 = vsel %vm77, %v51, 0
    %v352 = vsel %vm77, %v52, 0
    %v355 = vsel %vm77, %v53, 0
    %v358 = vsel %vm77, %v54, 0
    %360 = vmatprep.subr.mxu0 0.0
    %361 = vmatpush1.xpose.msra.mxu0 %v337
    %362 = vmatprep.subr.mxu0 0.0
    %363 = vmatpush1.xpose.msra.mxu0 %v340
    %364 = vmatprep.subr.mxu0 0.0
    %365 = vmatpush1.xpose.msra.mxu0 %v343
    %366 = vmatprep.subr.mxu0 0.0
    %367 = vmatpush1.xpose.msra.mxu0 %v346
    %368 = vmatprep.subr.mxu0 0.0
    %369 = vmatpush1.xpose.msra.mxu0 %v349
    %370 = vmatprep.subr.mxu0 0.0
    %371 = vmatpush1.xpose.msra.mxu0 %v352
    %372 = vmatprep.subr.mxu0 0.0
    %373 = vmatpush1.xpose.msra.mxu0 %v355
    %374 = vmatprep.subr.mxu0 0.0
    %375 = vmatpush1.xpose.msra.mxu0 %v358
    %376 = vmatprep.subr.mxu0 0.0
    %377 = vmatpush1.xpose.msra.mxu0 0.0
    %378 = vmatprep.subr.mxu0 0.0
    %379 = vmatpush1.xpose.msra.mxu0 0.0
    %380 = vmatprep.subr.mxu0 0.0
    %381 = vmatpush1.xpose.msra.mxu0 0.0
    %382 = vmatprep.subr.mxu0 0.0
    %383 = vmatpush1.xpose.msra.mxu0 0.0
    %384 = vmatprep.subr.mxu0 0.0
    %385 = vmatpush1.xpose.msra.mxu0 0.0
    %386 = vmatprep.subr.mxu0 0.0
    %387 = vmatpush1.xpose.msra.mxu0 0.0
    %388 = vmatprep.subr.mxu0 0.0
    %389 = vmatpush1.xpose.msra.mxu0 0.0
    %390 = vmatprep.subr.mxu0 0.0
    %391 = vmatpush1.xpose.msra.mxu0 0.0
    %392 = vmatprep.subr.mxu0 0.0
    %393 = vmatpush1.xpose.msra.mxu0 0.0
    %394 = vmatprep.subr.mxu0 0.0
    %395 = vmatpush1.xpose.msra.mxu0 0.0
    %396 = vmatprep.subr.mxu0 0.0
    %397 = vmatpush1.xpose.msra.mxu0 0.0
    %398 = vmatprep.subr.mxu0 0.0
    %399 = vmatpush1.xpose.msra.mxu0 0.0
    %400 = vmatprep.subr.mxu0 0.0
    %401 = vmatpush1.xpose.msra.mxu0 0.0
    %402 = vmatprep.subr.mxu0 0.0
    %403 = vmatpush1.xpose.msra.mxu0 0.0
    %404 = vmatprep.subr.mxu0 0.0
    %405 = vmatpush1.xpose.msra.mxu0 0.0
    %406 = vmatprep.subr.mxu0 0.0
    %407 = vmatpush1.xpose.msra.mxu0 0.0
    %408 = vmatprep.subr.mxu0 0.0
    %409 = vmatpush1.xpose.msra.mxu0 0.0
    %410 = vmatprep.subr.mxu0 0.0
    %411 = vmatpush1.xpose.msra.mxu0 0.0
    %412 = vmatprep.subr.mxu0 0.0
    %413 = vmatpush1.xpose.msra.mxu0 0.0
    %414 = vmatprep.subr.mxu0 0.0
    %415 = vmatpush1.xpose.msra.mxu0 0.0
    %416 = vmatprep.subr.mxu0 0.0
    %417 = vmatpush1.xpose.msra.mxu0 0.0
    %418 = vmatprep.subr.mxu0 0.0
    %419 = vmatpush1.xpose.msra.mxu0 0.0
    %420 = vmatprep.subr.mxu0 0.0
    %421 = vmatpush1.xpose.msra.mxu0 0.0
    %422 = vmatprep.subr.mxu0 0.0
    %423 = vmatpush1.xpose.msra.mxu0 0.0
    %424 = vmatprep.mubr.f32.mxu0 0.0
    %425 = vmatmul.mubr.f32.gmra.mrb[0].mxu0 %v337
    %v426 = vpop.f32.mrb[0].mxu0
    %v427 = vadd.f32 0.0, %v426
    %v428 = vpop.f32.mrb[0].mxu0
    %429 = vmatprep.mubr.f32.mxu0 0.0
    %430 = vmatmul.mubr.f32.gmra.mrb[0].mxu0 %v340
    %v431 = vpop.f32.mrb[0].mxu0
    %v432 = vadd.f32 0.0, %v431
    %v433 = vpop.f32.mrb[0].mxu0
    %434 = vmatprep.mubr.f32.mxu0 0.0
    %435 = vmatmul.mubr.f32.gmra.mrb[0].mxu0 %v343
    %v436 = vpop.f32.mrb[0].mxu0
    %v437 = vadd.f32 0.0, %v436
    %v438 = vpop.f32.mrb[0].mxu0
    %439 = vmatprep.mubr.f32.mxu0 0.0
    %440 = vmatmul.mubr.f32.gmra.mrb[0].mxu0 %v346
    %v441 = vpop.f32.mrb[0].mxu0
    %v442 = vadd.f32 0.0, %v441
    %v443 = vpop.f32.mrb[0].mxu0
    %444 = vmatprep.mubr.f32.mxu0 0.0
    %445 = vmatmul.mubr.f32.gmra.mrb[0].mxu0 %v349
    %v446 = vpop.f32.mrb[0].mxu0
    %v447 = vadd.f32 0.0, %v446
    %v448 = vpop.f32.mrb[0].mxu0
    %449 = vmatprep.mubr.f32.mxu0 0.0
    %450 = vmatmul.mubr.f32.gmra.mrb[0].mxu0 %v352
    %v451 = vpop.f32.mrb[0].mxu0
    %v452 = vadd.f32 0.0, %v451
    %v453 = vpop.f32.mrb[0].mxu0
    %454 = vmatprep.mubr.f32.mxu0 0.0
    %455 = vmatmul.mubr.f32.gmra.mrb[0].mxu0 %v355
    %v456 = vpop.f32.mrb[0].mxu0
    %v457 = vadd.f32 0.0, %v456
    %v458 = vpop.f32.mrb[0].mxu0
    %459 = vmatprep.mubr.f32.mxu0 0.0
    %460 = vmatmul.mubr.f32.gmra.mrb[0].mxu0 %v358
    %v461 = vpop.f32.mrb[0].mxu0
    %v462 = vadd.f32 0.0, %v461
    %v463 = vpop.f32.mrb[0].mxu0
    %464 = vdwg.mxu0
    %v466 = vsel %vm77, %v55, 0
    %v469 = vsel %vm77, %v56, 0
    %v472 = vsel %vm77, %v57, 0
    %v475 = vsel %vm77, %v58, 0
    %v478 = vsel %vm77, %v59, 0
    %v481 = vsel %vm77, %v60, 0
    %v484 = vsel %vm77, %v61, 0
    %v487 = vsel %vm77, %v62, 0
    %489 = vmatprep.subr.mxu0 0.0
    %490 = vmatpush1.xpose.msra.mxu0 %v466
    %491 = vmatprep.subr.mxu0 0.0
    %492 = vmatpush1.xpose.msra.mxu0 %v469
    %493 = vmatprep.subr.mxu0 0.0
    %494 = vmatpush1.xpose.msra.mxu0 %v472
    %495 = vmatprep.subr.mxu0 0.0
    %496 = vmatpush1.xpose.msra.mxu0 %v475
    %497 = vmatprep.subr.mxu0 0.0
    %498 = vmatpush1.xpose.msra.mxu0 %v478
    %499 = vmatprep.subr.mxu0 0.0
    %500 = vmatpush1.xpose.msra.mxu0 %v481
    %501 = vmatprep.subr.mxu0 0.0
    %502 = vmatpush1.xpose.msra.mxu0 %v484
    %503 = vmatprep.subr.mxu0 0.0
    %504 = vmatpush1.xpose.msra.mxu0 %v487
    %505 = vmatprep.subr.mxu0 0.0
    %506 = vmatpush1.xpose.msra.mxu0 0.0
    %507 = vmatprep.subr.mxu0 0.0
    %508 = vmatpush1.xpose.msra.mxu0 0.0
    %509 = vmatprep.subr.mxu0 0.0
    %510 = vmatpush1.xpose.msra.mxu0 0.0
    %511 = vmatprep.subr.mxu0 0.0
    %512 = vmatpush1.xpose.msra.mxu0 0.0
    %513 = vmatprep.subr.mxu0 0.0
    %514 = vmatpush1.xpose.msra.mxu0 0.0
    %515 = vmatprep.subr.mxu0 0.0
    %516 = vmatpush1.xpose.msra.mxu0 0.0
    %517 = vmatprep.subr.mxu0 0.0
    %518 = vmatpush1.xpose.msra.mxu0 0.0
    %519 = vmatprep.subr.mxu0 0.0
    %520 = vmatpush1.xpose.msra.mxu0 0.0
    %521 = vmatprep.subr.mxu0 0.0
    %522 = vmatpush1.xpose.msra.mxu0 0.0
    %523 = vmatprep.subr.mxu0 0.0
    %524 = vmatpush1.xpose.msra.mxu0 0.0
    %525 = vmatprep.subr.mxu0 0.0
    %526 = vmatpush1.xpose.msra.mxu0 0.0
    %527 = vmatprep.subr.mxu0 0.0
    %528 = vmatpush1.xpose.msra.mxu0 0.0
    %529 = vmatprep.subr.mxu0 0.0
    %530 = vmatpush1.xpose.msra.mxu0 0.0
    %531 = vmatprep.subr.mxu0 0.0
    %532 = vmatpush1.xpose.msra.mxu0 0.0
    %533 = vmatprep.subr.mxu0 0.0
    %534 = vmatpush1.xpose.msra.mxu0 0.0
    %535 = vmatprep.subr.mxu0 0.0
    %536 = vmatpush1.xpose.msra.mxu0 0.0
    %537 = vmatprep.subr.mxu0 0.0
    %538 = vmatpush1.xpose.msra.mxu0 0.0
    %539 = vmatprep.subr.mxu0 0.0
    %540 = vmatpush1.xpose.msra.mxu0 0.0
    %541 = vmatprep.subr.mxu0 0.0
    %542 = vmatpush1.xpose.msra.mxu0 0.0
    %543 = vmatprep.subr.mxu0 0.0
    %544 = vmatpush1.xpose.msra.mxu0 0.0
    %545 = vmatprep.subr.mxu0 0.0
    %546 = vmatpush1.xpose.msra.mxu0 0.0
    %547 = vmatprep.subr.mxu0 0.0
    %548 = vmatpush1.xpose.msra.mxu0 0.0
    %549 = vmatprep.subr.mxu0 0.0
    %550 = vmatpush1.xpose.msra.mxu0 0.0
    %551 = vmatprep.subr.mxu0 0.0
    %552 = vmatpush1.xpose.msra.mxu0 0.0
    %553 = vmatprep.mubr.f32.mxu0 0.0
    %554 = vmatmul.mubr.f32.gmra.mrb[0].mxu0 %v466
    %v555 = vpop.f32.mrb[0].mxu0
    %v556 = vadd.f32 0.0, %v555
    %v557 = vpop.f32.mrb[0].mxu0
    %558 = vmatprep.mubr.f32.mxu0 0.0
    %559 = vmatmul.mubr.f32.gmra.mrb[0].mxu0 %v469
    %v560 = vpop.f32.mrb[0].mxu0
    %v561 = vadd.f32 0.0, %v560
    %v562 = vpop.f32.mrb[0].mxu0
    %563 = vmatprep.mubr.f32.mxu0 0.0
    %564 = vmatmul.mubr.f32.gmra.mrb[0].mxu0 %v472
    %v565 = vpop.f32.mrb[0].mxu0
    %v566 = vadd.f32 0.0, %v565
    %v567 = vpop.f32.mrb[0].mxu0
    %568 = vmatprep.mubr.f32.mxu0 0.0
    %569 = vmatmul.mubr.f32.gmra.mrb[0].mxu0 %v475
    %v570 = vpop.f32.mrb[0].mxu0
    %v571 = vadd.f32 0.0, %v570
    %v572 = vpop.f32.mrb[0].mxu0
    %573 = vmatprep.mubr.f32.mxu0 0.0
    %574 = vmatmul.mubr.f32.gmra.mrb[0].mxu0 %v478
    %v575 = vpop.f32.mrb[0].mxu0
    %v576 = vadd.f32 0.0, %v575
    %v577 = vpop.f32.mrb[0].mxu0
    %578 = vmatprep.mubr.f32.mxu0 0.0
    %579 = vmatmul.mubr.f32.gmra.mrb[0].mxu0 %v481
    %v580 = vpop.f32.mrb[0].mxu0
    %v581 = vadd.f32 0.0, %v580
    %v582 = vpop.f32.mrb[0].mxu0
    %583 = vmatprep.mubr.f32.mxu0 0.0
    %584 = vmatmul.mubr.f32.gmra.mrb[0].mxu0 %v484
    %v585 = vpop.f32.mrb[0].mxu0
    %v586 = vadd.f32 0.0, %v585
    %v587 = vpop.f32.mrb[0].mxu0
    %588 = vmatprep.mubr.f32.mxu0 0.0
    %589 = vmatmul.mubr.f32.gmra.mrb[0].mxu0 %v487
    %v590 = vpop.f32.mrb[0].mxu0
    %v591 = vadd.f32 0.0, %v590
    %v592 = vpop.f32.mrb[0].mxu0
    %593 = vdwg.mxu0
    %v594 = vlaneseq
    %v595 = vshrl.u32 %v594, 7
    %v596 = vadd.s32 %v595, 8
    %v597 = vadd.s32 %v595, 16
    %v598 = vadd.s32 %v595, 24
    %v599 = vadd.s32 %v595, 32
    %v600 = vadd.s32 %v595, 40
    %v601 = vadd.s32 %v595, 48
    %v602 = vadd.s32 %v595, 56
    %vm603 = vcmp.eq.s32.totalorder %v595, %v64
    %vm604 = vcmp.eq.s32.totalorder %v596, %v64
    %vm605 = vcmp.eq.s32.totalorder %v597, %v64
    %vm606 = vcmp.eq.s32.totalorder %v598, %v64
    %vm607 = vcmp.eq.s32.totalorder %v599, %v64
    %vm608 = vcmp.eq.s32.totalorder %v600, %v64
    %vm609 = vcmp.eq.s32.totalorder %v601, %v64
    %vm610 = vcmp.eq.s32.totalorder %v602, %v64
    %v611 = vsel %vm603, 1, 0
    %v612 = vsel %vm604, 1, 0
    %v613 = vsel %vm605, 1, 0
    %v614 = vsel %vm606, 1, 0
    %v615 = vsel %vm607, 1, 0
    %v616 = vsel %vm608, 1, 0
    %v617 = vsel %vm609, 1, 0
    %v618 = vsel %vm610, 1, 0
    %v619 = vcvt.s32.f32 %v611
    %v620 = vcvt.s32.f32 %v612
    %v621 = vcvt.s32.f32 %v613
    %v622 = vcvt.s32.f32 %v614
    %v623 = vcvt.s32.f32 %v615
    %v624 = vcvt.s32.f32 %v616
    %v625 = vcvt.s32.f32 %v617
    %v626 = vcvt.s32.f32 %v618
    %v627 = vsub.f32 %v169, %v619
    %v628 = vsub.f32 %v174, %v620
    %v629 = vsub.f32 %v179, %v621
    %v630 = vsub.f32 %v184, %v622
    %v631 = vsub.f32 %v189, %v623
    %v632 = vsub.f32 %v194, %v624
    %v633 = vsub.f32 %v199, %v625
    %v634 = vsub.f32 %v204, %v626
    %v635 = vsub.f32 %v298, %v619
    %v636 = vsub.f32 %v303, %v620
    %v637 = vsub.f32 %v308, %v621
    %v638 = vsub.f32 %v313, %v622
    %v639 = vsub.f32 %v318, %v623
    %v640 = vsub.f32 %v323, %v624
    %v641 = vsub.f32 %v328, %v625
    %v642 = vsub.f32 %v333, %v626
    %v643 = vsub.f32 %v427, %v619
    %v644 = vsub.f32 %v432, %v620
    %v645 = vsub.f32 %v437, %v621
    %v646 = vsub.f32 %v442, %v622
    %v647 = vsub.f32 %v447, %v623
    %v648 = vsub.f32 %v452, %v624
    %v649 = vsub.f32 %v457, %v625
    %v650 = vsub.f32 %v462, %v626
    %v651 = vsub.f32 %v556, %v619
    %v652 = vsub.f32 %v561, %v620
    %v653 = vsub.f32 %v566, %v621
    %v654 = vsub.f32 %v571, %v622
    %v655 = vsub.f32 %v576, %v623
    %v656 = vsub.f32 %v581, %v624
    %v657 = vsub.f32 %v586, %v625
    %v658 = vsub.f32 %v591, %v626
    %v659 = vmul.f32 %v627, %v627
    %v660 = vmul.f32 %v628, %v628
    %v661 = vmul.f32 %v629, %v629
    %v662 = vmul.f32 %v630, %v630
    %v663 = vmul.f32 %v631, %v631
    %v664 = vmul.f32 %v632, %v632
    %v665 = vmul.f32 %v633, %v633
    %v666 = vmul.f32 %v634, %v634
    %v667 = vmul.f32 %v635, %v635
    %v668 = vmul.f32 %v636, %v636
    %v669 = vmul.f32 %v637, %v637
    %v670 = vmul.f32 %v638, %v638
    %v671 = vmul.f32 %v639, %v639
    %v672 = vmul.f32 %v640, %v640
    %v673 = vmul.f32 %v641, %v641
    %v674 = vmul.f32 %v642, %v642
    %v675 = vmul.f32 %v643, %v643
    %v676 = vmul.f32 %v644, %v644
    %v677 = vmul.f32 %v645, %v645
    %v678 = vmul.f32 %v646, %v646
    %v679 = vmul.f32 %v647, %v647
    %v680 = vmul.f32 %v648, %v648
    %v681 = vmul.f32 %v649, %v649
    %v682 = vmul.f32 %v650, %v650
    %v683 = vmul.f32 %v651, %v651
    %v684 = vmul.f32 %v652, %v652
    %v685 = vmul.f32 %v653, %v653
    %v686 = vmul.f32 %v654, %v654
    %v687 = vmul.f32 %v655, %v655
    %v688 = vmul.f32 %v656, %v656
    %v689 = vmul.f32 %v657, %v657
    %v690 = vmul.f32 %v658, %v658
    %v691 = vsel %vm77, %v659, 0.0
    %692 = vadd.xlane.f32.xlu0 %v691
    %v693 = vpop.xlane.xlu0 %692
    %v694 = vsel %vm77, %v660, 0.0
    %695 = vadd.xlane.f32.xlu0 %v694
    %v696 = vpop.xlane.xlu0 %695
    %v697 = vsel %vm77, %v661, 0.0
    %698 = vadd.xlane.f32.xlu0 %v697
    %v699 = vpop.xlane.xlu0 %698
    %v700 = vsel %vm77, %v662, 0.0
    %701 = vadd.xlane.f32.xlu0 %v700
    %v702 = vpop.xlane.xlu0 %701
    %v703 = vsel %vm77, %v663, 0.0
    %704 = vadd.xlane.f32.xlu0 %v703
    %v705 = vpop.xlane.xlu0 %704
    %v706 = vsel %vm77, %v664, 0.0
    %707 = vadd.xlane.f32.xlu0 %v706
    %v708 = vpop.xlane.xlu0 %707
    %v709 = vsel %vm77, %v665, 0.0
    %710 = vadd.xlane.f32.xlu0 %v709
    %v711 = vpop.xlane.xlu0 %710
    %v712 = vsel %vm77, %v666, 0.0
    %713 = vadd.xlane.f32.xlu0 %v712
    %v714 = vpop.xlane.xlu0 %713
    %v715 = vsel %vm77, %v667, 0.0
    %716 = vadd.xlane.f32.xlu0 %v715
    %v717 = vpop.xlane.xlu0 %716
    %v718 = vsel %vm77, %v668, 0.0
    %719 = vadd.xlane.f32.xlu0 %v718
    %v720 = vpop.xlane.xlu0 %719
    %v721 = vsel %vm77, %v669, 0.0
    %722 = vadd.xlane.f32.xlu0 %v721
    %v723 = vpop.xlane.xlu0 %722
    %v724 = vsel %vm77, %v670, 0.0
    %725 = vadd.xlane.f32.xlu0 %v724
    %v726 = vpop.xlane.xlu0 %725
    %v727 = vsel %vm77, %v671, 0.0
    %728 = vadd.xlane.f32.xlu0 %v727
    %v729 = vpop.xlane.xlu0 %728
    %v730 = vsel %vm77, %v672, 0.0
    %731 = vadd.xlane.f32.xlu0 %v730
    %v732 = vpop.xlane.xlu0 %731
    %v733 = vsel %vm77, %v673, 0.0
    %734 = vadd.xlane.f32.xlu0 %v733
    %v735 = vpop.xlane.xlu0 %734
    %v736 = vsel %vm77, %v674, 0.0
    %737 = vadd.xlane.f32.xlu0 %v736
    %v738 = vpop.xlane.xlu0 %737
    %v739 = vsel %vm77, %v675, 0.0
    %740 = vadd.xlane.f32.xlu0 %v739
    %v741 = vpop.xlane.xlu0 %740
    %v742 = vsel %vm77, %v676, 0.0
    %743 = vadd.xlane.f32.xlu0 %v742
    %v744 = vpop.xlane.xlu0 %743
    %v745 = vsel %vm77, %v677, 0.0
    %746 = vadd.xlane.f32.xlu0 %v745
    %v747 = vpop.xlane.xlu0 %746
    %v748 = vsel %vm77, %v678, 0.0
    %749 = vadd.xlane.f32.xlu0 %v748
    %v750 = vpop.xlane.xlu0 %749
    %v751 = vsel %vm77, %v679, 0.0
    %752 = vadd.xlane.f32.xlu0 %v751
    %v753 = vpop.xlane.xlu0 %752
    %v754 = vsel %vm77, %v680, 0.0
    %755 = vadd.xlane.f32.xlu0 %v754
    %v756 = vpop.xlane.xlu0 %755
    %v757 = vsel %vm77, %v681, 0.0
    %758 = vadd.xlane.f32.xlu0 %v757
    %v759 = vpop.xlane.xlu0 %758
    %v760 = vsel %vm77, %v682, 0.0
    %761 = vadd.xlane.f32.xlu0 %v760
    %v762 = vpop.xlane.xlu0 %761
    %v763 = vsel %vm77, %v683, 0.0
    %764 = vadd.xlane.f32.xlu0 %v763
    %v765 = vpop.xlane.xlu0 %764
    %v766 = vsel %vm77, %v684, 0.0
    %767 = vadd.xlane.f32.xlu0 %v766
    %v768 = vpop.xlane.xlu0 %767
    %v769 = vsel %vm77, %v685, 0.0
    %770 = vadd.xlane.f32.xlu0 %v769
    %v771 = vpop.xlane.xlu0 %770
    %v772 = vsel %vm77, %v686, 0.0
    %773 = vadd.xlane.f32.xlu0 %v772
    %v774 = vpop.xlane.xlu0 %773
    %v775 = vsel %vm77, %v687, 0.0
    %776 = vadd.xlane.f32.xlu0 %v775
    %v777 = vpop.xlane.xlu0 %776
    %v778 = vsel %vm77, %v688, 0.0
    %779 = vadd.xlane.f32.xlu0 %v778
    %v780 = vpop.xlane.xlu0 %779
    %v781 = vsel %vm77, %v689, 0.0
    %782 = vadd.xlane.f32.xlu0 %v781
    %v783 = vpop.xlane.xlu0 %782
    %v784 = vsel %vm77, %v690, 0.0
    %785 = vadd.xlane.f32.xlu0 %v784
    %v786 = vpop.xlane.xlu0 %785
    %v819 = vlaneseq
    %v820 = vshrl.u32 %v819, 7
    %v821 = vsub.s32 %v64, %v820
    %v822 = vrot.slane %v693, %v821
    %v823 = vadd.s32 %v64, 4294967288
    %v824 = vlaneseq
    %v825 = vshrl.u32 %v824, 7
    %v826 = vsub.s32 %v823, %v825
    %v827 = vrot.slane %v696, %v826
    %vm828 = vcmask 130112
    %v829 = vsel %vm828, %v827, %v822
    %v830 = vadd.s32 %v64, 4294967280
    %v831 = vlaneseq
    %v832 = vshrl.u32 %v831, 7
    %v833 = vsub.s32 %v830, %v832
    %v834 = vrot.slane %v699, %v833
    %vm835 = vcmask 195712
    %v836 = vsel %vm835, %v834, %v829
    %v837 = vadd.s32 %v64, 4294967272
    %v838 = vlaneseq
    %v839 = vshrl.u32 %v838, 7
    %v840 = vsub.s32 %v837, %v839
    %v841 = vrot.slane %v702, %v840
    %vm842 = vcmask 261312
    %v843 = vsel %vm842, %v841, %v836
    %v844 = vadd.s32 %v64, 4294967264
    %v845 = vlaneseq
    %v846 = vshrl.u32 %v845, 7
    %v847 = vsub.s32 %v844, %v846
    %v848 = vrot.slane %v705, %v847
    %vm849 = vcmask 326912
    %v850 = vsel %vm849, %v848, %v843
    %v851 = vadd.s32 %v64, 4294967256
    %v852 = vlaneseq
    %v853 = vshrl.u32 %v852, 7
    %v854 = vsub.s32 %v851, %v853
    %v855 = vrot.slane %v708, %v854
    %vm856 = vcmask 392512
    %v857 = vsel %vm856, %v855, %v850
    %v858 = vadd.s32 %v64, 4294967248
    %v859 = vlaneseq
    %v860 = vshrl.u32 %v859, 7
    %v861 = vsub.s32 %v858, %v860
    %v862 = vrot.slane %v711, %v861
    %vm863 = vcmask 458112
    %v864 = vsel %vm863, %v862, %v857
    %v865 = vadd.s32 %v64, 4294967240
    %v866 = vlaneseq
    %v867 = vshrl.u32 %v866, 7
    %v868 = vsub.s32 %v865, %v867
    %v869 = vrot.slane %v714, %v868
    %vm870 = vcmask 523712
    %v871 = vsel %vm870, %v869, %v864
    %v872 = vlaneseq
    %v873 = vshrl.u32 %v872, 7
    %v874 = vsub.s32 %v64, %v873
    %v875 = vrot.slane %v717, %v874
    %v876 = vlaneseq
    %v877 = vshrl.u32 %v876, 7
    %v878 = vsub.s32 %v823, %v877
    %v879 = vrot.slane %v720, %v878
    %v880 = vsel %vm828, %v879, %v875
    %v881 = vlaneseq
    %v882 = vshrl.u32 %v881, 7
    %v883 = vsub.s32 %v830, %v882
    %v884 = vrot.slane %v723, %v883
    %v885 = vsel %vm835, %v884, %v880
    %v886 = vlaneseq
    %v887 = vshrl.u32 %v886, 7
    %v888 = vsub.s32 %v837, %v887
    %v889 = vrot.slane %v726, %v888
    %v890 = vsel %vm842, %v889, %v885
    %v891 = vlaneseq
    %v892 = vshrl.u32 %v891, 7
    %v893 = vsub.s32 %v844, %v892
    %v894 = vrot.slane %v729, %v893
    %v895 = vsel %vm849, %v894, %v890
    %v896 = vlaneseq
    %v897 = vshrl.u32 %v896, 7
    %v898 = vsub.s32 %v851, %v897
    %v899 = vrot.slane %v732, %v898
    %v900 = vsel %vm856, %v899, %v895
    %v901 = vlaneseq
    %v902 = vshrl.u32 %v901, 7
    %v903 = vsub.s32 %v858, %v902
    %v904 = vrot.slane %v735, %v903
    %v905 = vsel %vm863, %v904, %v900
    %v906 = vlaneseq
    %v907 = vshrl.u32 %v906, 7
    %v908 = vsub.s32 %v865, %v907
    %v909 = vrot.slane %v738, %v908
    %v910 = vsel %vm870, %v909, %v905
    %v911 = vlaneseq
    %v912 = vshrl.u32 %v911, 7
    %v913 = vsub.s32 %v64, %v912
    %v914 = vrot.slane %v741, %v913
    %v915 = vlaneseq
    %v916 = vshrl.u32 %v915, 7
    %v917 = vsub.s32 %v823, %v916
    %v918 = vrot.slane %v744, %v917
    %v919 = vsel %vm828, %v918, %v914
    %v920 = vlaneseq
    %v921 = vshrl.u32 %v920, 7
    %v922 = vsub.s32 %v830, %v921
    %v923 = vrot.slane %v747, %v922
    %v924 = vsel %vm835, %v923, %v919
    %v925 = vlaneseq
    %v926 = vshrl.u32 %v925, 7
    %v927 = vsub.s32 %v837, %v926
    %v928 = vrot.slane %v750, %v927
    %v929 = vsel %vm842, %v928, %v924
    %v930 = vlaneseq
    %v931 = vshrl.u32 %v930, 7
    %v932 = vsub.s32 %v844, %v931
    %v933 = vrot.slane %v753, %v932
    %v934 = vsel %vm849, %v933, %v929
    %v935 = vlaneseq
    %v936 = vshrl.u32 %v935, 7
    %v937 = vsub.s32 %v851, %v936
    %v938 = vrot.slane %v756, %v937
    %v939 = vsel %vm856, %v938, %v934
    %v940 = vlaneseq
    %v941 = vshrl.u32 %v940, 7
    %v942 = vsub.s32 %v858, %v941
    %v943 = vrot.slane %v759, %v942
    %v944 = vsel %vm863, %v943, %v939
    %v945 = vlaneseq
    %v946 = vshrl.u32 %v945, 7
    %v947 = vsub.s32 %v865, %v946
    %v948 = vrot.slane %v762, %v947
    %v949 = vsel %vm870, %v948, %v944
    %v950 = vlaneseq
    %v951 = vshrl.u32 %v950, 7
    %v952 = vsub.s32 %v64, %v951
    %v953 = vrot.slane %v765, %v952
    %v954 = vlaneseq
    %v955 = vshrl.u32 %v954, 7
    %v956 = vsub.s32 %v823, %v955
    %v957 = vrot.slane %v768, %v956
    %v958 = vsel %vm828, %v957, %v953
    %v959 = vlaneseq
    %v960 = vshrl.u32 %v959, 7
    %v961 = vsub.s32 %v830, %v960
    %v962 = vrot.slane %v771, %v961
    %v963 = vsel %vm835, %v962, %v958
    %v964 = vlaneseq
    %v965 = vshrl.u32 %v964, 7
    %v966 = vsub.s32 %v837, %v965
    %v967 = vrot.slane %v774, %v966
    %v968 = vsel %vm842, %v967, %v963
    %v969 = vlaneseq
    %v970 = vshrl.u32 %v969, 7
    %v971 = vsub.s32 %v844, %v970
    %v972 = vrot.slane %v777, %v971
    %v973 = vsel %vm849, %v972, %v968
    %v974 = vlaneseq
    %v975 = vshrl.u32 %v974, 7
    %v976 = vsub.s32 %v851, %v975
    %v977 = vrot.slane %v780, %v976
    %v978 = vsel %vm856, %v977, %v973
    %v979 = vlaneseq
    %v980 = vshrl.u32 %v979, 7
    %v981 = vsub.s32 %v858, %v980
    %v982 = vrot.slane %v783, %v981
    %v983 = vsel %vm863, %v982, %v978
    %v984 = vlaneseq
    %v985 = vshrl.u32 %v984, 7
    %v986 = vsub.s32 %v865, %v985
    %v987 = vrot.slane %v786, %v986
    %v988 = vsel %vm870, %v987, %v983
    %vm989 = vcmask 1041409
    %v990 = vsel %vm989, %v910, %v871
    %vm991 = vcmask 1042434
    %v992 = vsel %vm991, %v949, %v990
    %vm993 = vcmask 1043459
    %v994 = vsel %vm993, %v988, %v992
    %vm996 = vcmask 519168
    %v997 = vsel %vm996, %v994, 0.0
    %998 = vadd.xlane.f32.xlu0 %v997
    %v999 = vpop.xlane.xlu0 %998
    %v1000 = vrsqrt.pop %v999
    %v1001 = vmul.f32 %v999, %v1000
    %vm1002 = vcmp.eq.f32.partialorder %v999, inf
    %v1003 = vsel %vm1002, %v999, %v1001
    %vm1004 = vcmp.eq.f32.partialorder %v999, 0.0
    %v1005 = vand.u32 %v999, 2147483648
    %v1006 = vsel %vm1004, %v1005, %v1003
    %vm1007 = vcmask 3072
    %v1008 = vsel %vm1007, %v76, 0.0
    %1009 = vadd.xlane.f32.xlu0 %v1008
    %v1010 = vpop.xlane.xlu0 %1009
    %v1011 = vrot.slane %v1010, 4
    %v1012 = vadd.f32 %v1010, %v1011
    %v1013 = vrot.slane %v1012, 2
    %v1014 = vadd.f32 %v1012, %v1013
    %v1015 = vrot.slane %v1014, 1
    %v1016 = vadd.f32 %v1014, %v1015
    %s1017 = vtos %v1016
    %v1018 = vsel %vm1007, %v1006, 0.0
    %1019 = vadd.xlane.f32.xlu0 %v1018
    %v1020 = vpop.xlane.xlu0 %1019
    %v1021 = vrot.slane %v1020, 4
    %v1022 = vadd.f32 %v1020, %v1021
    %v1023 = vrot.slane %v1022, 2
    %v1024 = vadd.f32 %v1022, %v1023
    %v1025 = vrot.slane %v1024, 1
    %v1026 = vadd.f32 %v1024, %v1025
    %s1027 = vtos %v1026
    %s1028 = smul.f32 %s1027, 0.001
    %s1029 = sadd.f32 %s1017, %s1028
    %v1030 = vrcp.pop 4.0
    %s1031 = vtos %v1030
    %s1032 = smul.f32 %s1029, %s1031
    %s1033 = scalar_lea.smem [#allocation5], 0
    %1034 = sst [smem:[%s1033]] %s1032
    // Predicated region
    $region18: #{tpu_custom_call.1} parent=1 // pred_check
      _
    $region19: #{tpu_custom_call.1} parent=1 // pred_check_branch
      %1036 = sbr.rel (0) target = $region21
    $region20: #{tpu_custom_call.1} parent=1 // pred_region
      %s1038 = ssub.s32 16, 16
      %1039 = vsyncadd [#allocation4], %s1038
      %1042 = dma.smem_to_hbm [#allocation5], 16, %s3, [#allocation4]
    $region21: #{tpu_custom_call.1} parent=1 // pred_fallthru
      _
    // Predicated region
    $region22: #{tpu_custom_call.1} parent=1 // pred_check
      _
    $region23: #{tpu_custom_call.1} parent=1 // pred_check_branch
      %1044 = sbr.rel (0) target = $region25
    $region24: #{tpu_custom_call.1} parent=1 // pred_region
      %1045 = dma.done [#allocation4], 16
    $region25: #{tpu_custom_call.1} parent=1 // pred_fallthru
      _
    %1046 = sfence
    %1047 = vsyncpa [#allocation3], 1
    %1048 = vsyncpa [#allocation4], 1

</llo_original>
